<compile_context>
chip_gen: v5e
topology: v5e:2x2
jax: 0.10.0
libtpu: 0.0.40
codegen_flags: <defaults>
</compile_context>

<pallas_src>
import functools

import jax
import jax.numpy as jnp
from jax.experimental import pallas as pl
from jax.experimental.pallas import tpu as pltpu

IN_F, HID_F, OUT_F = 30, 8, 2
PACK = 4                                   # batch rows packed per lane-row
IN_P, HID_P, OUT_P = PACK * IN_F, PACK * HID_F, PACK * OUT_F   # 120, 32, 8

# Packed rows per grid step (= 4x this many batch rows).  Per-buffer VMEM is
# ~tm*512 B for the x block and ~tm*512 B for the out block (lane dim padded
# to 128), so 4096 packed rows ~ 8 MiB double-buffered.  Sweep upward on v7x.
TM_PACKED_DEFAULT = 4096


def _round_up(n, m):
    return ((n + m - 1) // m) * m


def mlp_kernel(x_ref, w1_ref, b1_ref, w2_ref, b2_ref, o_ref):
    # x tile: (tm, 120) in its native dtype; MXU accumulates in f32 via
    # preferred_element_type (equivalent to the module's x.float() math).
    h = jnp.dot(x_ref[...], w1_ref[...], preferred_element_type=jnp.float32)
    h = jnp.maximum(h + b1_ref[...], 0.0)                        # ReLU
    o_ref[...] = (
        jnp.dot(h, w2_ref[...], preferred_element_type=jnp.float32) + b2_ref[...]
    )


@functools.partial(jax.jit, static_argnames=("tm_packed",))
def mlp_forward(x, w1_bd, b1_t, w2_bd, b2_t, *, tm_packed=TM_PACKED_DEFAULT):
    """x: (B, 30) float dtype; packed block-diagonal params; returns (B, 2) f32."""
    B = x.shape[0]
    itemsize = jnp.dtype(x.dtype).itemsize
    # Sublane quantum of the x block: 8 rows (f32), 16 (bf16), 32 (int8).
    sub = max(8, 32 // max(itemsize, 1))

    # Pad batch so the packed row count is a multiple of the sublane quantum.
    row_mult = PACK * sub
    B_pad = _round_up(max(B, 1), row_mult)
    if B_pad != B:
        x = jnp.pad(x, ((0, B_pad - B), (0, 0)))  # zero rows; sliced off below

    Bp = B_pad // PACK                       # packed rows
    xp = x.reshape(Bp, IN_P)                 # free row-major reshape

    # Tile size: never exceed the array; guarantee >= 2 grid steps when the
    # batch allows so pipelining / megacore sharding actually engage.
    tm = min(tm_packed, Bp)
    if Bp > 2 * sub:
        tm = min(tm, _round_up(pl.cdiv(Bp, 2), sub))
    grid = (pl.cdiv(Bp, tm),)

    # Real (lane-padded) VMEM footprint: lane dim pads to 128 for both the
    # (tm, 120) x block and the (tm, 8) f32 out block; double-buffered.
    x_block_bytes = tm * 128 * itemsize
    o_block_bytes = tm * 128 * 4
    vmem_bytes = 2 * (x_block_bytes + o_block_bytes) + (1 << 20)  # + weights/headroom
    vmem_bytes = int(min(max(vmem_bytes, 16 << 20), 48 << 20))

    weight_bytes = (IN_P * HID_P + HID_P + HID_P * OUT_P + OUT_P) * 4
    cost = pl.CostEstimate(
        flops=2 * B_pad * (IN_F * HID_F + HID_F * OUT_F),
        transcendentals=0,
        bytes_accessed=B_pad * IN_F * itemsize + B_pad * OUT_F * 4 + weight_bytes,
    )

    out = pl.pallas_call(
        mlp_kernel,
        out_shape=jax.ShapeDtypeStruct((Bp, OUT_P), jnp.float32),
        grid=grid,
        in_specs=[
            pl.BlockSpec((tm, IN_P), lambda i: (i, 0)),   # streamed x tiles
            pl.BlockSpec(w1_bd.shape, lambda i: (0, 0)),  # VMEM-resident weights
            pl.BlockSpec(b1_t.shape, lambda i: (0, 0)),
            pl.BlockSpec(w2_bd.shape, lambda i: (0, 0)),
            pl.BlockSpec(b2_t.shape, lambda i: (0, 0)),
        ],
        out_specs=pl.BlockSpec((tm, OUT_P), lambda i: (i, 0)),
        compiler_params=pltpu.CompilerParams(
            # Batch axis is embarrassingly parallel -> shards across the two
            # TensorCores on v7x; harmless on v5e/v6e.
            dimension_semantics=("parallel",),
            vmem_limit_bytes=vmem_bytes,
        ),
        cost_estimate=cost,
    )(xp, w1_bd, b1_t, w2_bd, b2_t)

    return out.reshape(B_pad, OUT_F)[:B]     # free reshape + slice


def init_params(key):
    """Deterministic init matching nn.Linear defaults.  PyTorch stores weight
    as [out, in]; we keep the transposed [in, out] (parameter plumbing only)."""
    k1, k2, k3, k4 = jax.random.split(key, 4)
    bound1 = 1.0 / jnp.sqrt(float(IN_F))
    bound2 = 1.0 / jnp.sqrt(float(HID_F))
    w1 = jax.random.uniform(k1, (IN_F, HID_F), jnp.float32, -bound1, bound1)
    b1 = jax.random.uniform(k2, (1, HID_F), jnp.float32, -bound1, bound1)
    w2 = jax.random.uniform(k3, (HID_F, OUT_F), jnp.float32, -bound2, bound2)
    b2 = jax.random.uniform(k4, (1, OUT_F), jnp.float32, -bound2, bound2)
    return w1, b1, w2, b2


def pack_params(w1, b1, w2, b2):
    """Build the block-diagonal / tiled parameters used by the packed kernel.
    Done once at init time (pure parameter plumbing, not per-call work)."""
    eye = jnp.eye(PACK, dtype=w1.dtype)
    w1_bd = jnp.kron(eye, w1)                # (120, 32), 4 copies of W1 on the diag
    w2_bd = jnp.kron(eye, w2)                # (32, 8),   4 copies of W2 on the diag
    b1_t = jnp.tile(b1, (1, PACK))           # (1, 32)
    b2_t = jnp.tile(b2, (1, PACK))           # (1, 8)
    return w1_bd, b1_t, w2_bd, b2_t


if __name__ == "__main__":
    key = jax.random.PRNGKey(0)
    k_x, k_p = jax.random.split(key)

    batch = 64  # small test batch; wrapper handles any B
    x = jax.random.normal(k_x, (batch, IN_F), jnp.float32)
    w1, b1, w2, b2 = init_params(k_p)
    w1_bd, b1_t, w2_bd, b2_t = pack_params(w1, b1, w2, b2)

    out = mlp_forward(x, w1_bd, b1_t, w2_bd, b2_t)
    jax.block_until_ready(out)

    # Reference check in plain JAX (same math as the PyTorch forward).
    ref = jnp.maximum(x @ w1 + b1, 0.0) @ w2 + b2
    assert out.shape == (batch, OUT_F)
    assert jnp.allclose(out, ref, atol=1e-5, rtol=1e-5)

    # Batch that is neither a multiple of PACK nor of the sublane quantum.
    x_odd = jax.random.normal(k_x, (37, IN_F), jnp.float32)
    out_odd = mlp_forward(x_odd, w1_bd, b1_t, w2_bd, b2_t)
    jax.block_until_ready(out_odd)
    ref_odd = jnp.maximum(x_odd @ w1 + b1, 0.0) @ w2 + b2
    assert out_odd.shape == (37, OUT_F)
    assert jnp.allclose(out_odd, ref_odd, atol=1e-5, rtol=1e-5)

    print("KERNEL_OK")
</pallas_src>

<mosaic_0001>
module attributes {stable_mosaic.version = 11 : i64} {
  func.func @mlp_kernel(%arg0: i32, %arg1: memref<16x120xf32, #tpu.memory_space<vmem>>, %arg2: memref<120x32xf32, #tpu.memory_space<vmem>>, %arg3: memref<1x32xf32, #tpu.memory_space<vmem>>, %arg4: memref<32x8xf32, #tpu.memory_space<vmem>>, %arg5: memref<1x8xf32, #tpu.memory_space<vmem>>, %arg6: memref<16x8xf32, #tpu.memory_space<vmem>>) attributes {dimension_semantics = [#tpu.dimension_semantics<parallel>], iteration_bounds = array<i64: 1>, scalar_prefetch = 0 : i64, scratch_operands = 0 : i64, tpu.core_type = #tpu.core_type<tc>, window_params = [{transform_indices = @transform_0, window_bounds = array<i64: 16, 120>}, {pipeline_mode = #tpu.pipeline_mode<synchronous>, transform_indices = @transform_1, window_bounds = array<i64: 120, 32>}, {pipeline_mode = #tpu.pipeline_mode<synchronous>, transform_indices = @transform_2, window_bounds = array<i64: 1, 32>}, {pipeline_mode = #tpu.pipeline_mode<synchronous>, transform_indices = @transform_3, window_bounds = array<i64: 32, 8>}, {pipeline_mode = #tpu.pipeline_mode<synchronous>, transform_indices = @transform_4, window_bounds = array<i64: 1, 8>}, {transform_indices = @transform_5, window_bounds = array<i64: 16, 8>}]} {
    %c0 = arith.constant 0 : index
    %c0_0 = arith.constant 0 : index
    %0 = vector.load %arg1[%c0, %c0_0] : memref<16x120xf32, #tpu.memory_space<vmem>>, vector<16x120xf32>
    %c0_1 = arith.constant 0 : index
    %c0_2 = arith.constant 0 : index
    %1 = vector.load %arg2[%c0_1, %c0_2] : memref<120x32xf32, #tpu.memory_space<vmem>>, vector<120x32xf32>
    %cst = arith.constant dense<0.000000e+00> : vector<16x32xf32>
    %2 = tpu.matmul %0, %1, %cst {dimension_numbers = #tpu.dot_dimension_numbers<[1], [0], [0], [1], [0, 0, 1, 1], [], []>} : vector<16x120xf32>, vector<120x32xf32>, vector<16x32xf32> -> vector<16x32xf32>
    %c0_3 = arith.constant 0 : index
    %c0_4 = arith.constant 0 : index
    %3 = vector.load %arg3[%c0_3, %c0_4] : memref<1x32xf32, #tpu.memory_space<vmem>>, vector<1x32xf32>
    %4 = vector.broadcast %3 : vector<1x32xf32> to vector<16x32xf32>
    %5 = arith.addf %2, %4 : vector<16x32xf32>
    %cst_5 = arith.constant 0.000000e+00 : f32
    %6 = vector.broadcast %cst_5 : f32 to vector<16x32xf32>
    %7 = arith.maximumf %5, %6 : vector<16x32xf32>
    %c0_6 = arith.constant 0 : index
    %c0_7 = arith.constant 0 : index
    %8 = vector.load %arg4[%c0_6, %c0_7] : memref<32x8xf32, #tpu.memory_space<vmem>>, vector<32x8xf32>
    %cst_8 = arith.constant dense<0.000000e+00> : vector<16x8xf32>
    %9 = tpu.matmul %7, %8, %cst_8 {dimension_numbers = #tpu.dot_dimension_numbers<[1], [0], [0], [1], [0, 0, 1, 1], [], []>} : vector<16x32xf32>, vector<32x8xf32>, vector<16x8xf32> -> vector<16x8xf32>
    %c0_9 = arith.constant 0 : index
    %c0_10 = arith.constant 0 : index
    %10 = vector.load %arg5[%c0_9, %c0_10] : memref<1x8xf32, #tpu.memory_space<vmem>>, vector<1x8xf32>
    %11 = vector.broadcast %10 : vector<1x8xf32> to vector<16x8xf32>
    %12 = arith.addf %9, %11 : vector<16x8xf32>
    %c0_11 = arith.constant 0 : index
    %c0_12 = arith.constant 0 : index
    %13 = vector.load %arg6[%c0_11, %c0_12] : memref<16x8xf32, #tpu.memory_space<vmem>>, vector<16x8xf32>
    tpu.vector_store %arg6[%c0_11, %c0_12], %12 {strides = array<i32>} : memref<16x8xf32, #tpu.memory_space<vmem>>, vector<16x8xf32>,
    return
  }
  func.func @transform_0(%arg0: i32) -> (i32, i32) {
    %c0_i32 = arith.constant 0 : i32
    %c0_i32_0 = arith.constant 0 : i32
    return %arg0, %c0_i32 : i32, i32
  }
  func.func @transform_1(%arg0: i32) -> (i32, i32) {
    %c0_i32 = arith.constant 0 : i32
    %c0_i32_0 = arith.constant 0 : i32
    %c0_i32_1 = arith.constant 0 : i32
    return %c0_i32, %c0_i32_0 : i32, i32
  }
  func.func @transform_2(%arg0: i32) -> (i32, i32) {
    %c0_i32 = arith.constant 0 : i32
    %c0_i32_0 = arith.constant 0 : i32
    %c0_i32_1 = arith.constant 0 : i32
    return %c0_i32, %c0_i32_0 : i32, i32
  }
  func.func @transform_3(%arg0: i32) -> (i32, i32) {
    %c0_i32 = arith.constant 0 : i32
    %c0_i32_0 = arith.constant 0 : i32
    %c0_i32_1 = arith.constant 0 : i32
    return %c0_i32, %c0_i32_0 : i32, i32
  }
  func.func @transform_4(%arg0: i32) -> (i32, i32) {
    %c0_i32 = arith.constant 0 : i32
    %c0_i32_0 = arith.constant 0 : i32
    %c0_i32_1 = arith.constant 0 : i32
    return %c0_i32, %c0_i32_0 : i32, i32
  }
  func.func @transform_5(%arg0: i32) -> (i32, i32) {
    %c0_i32 = arith.constant 0 : i32
    %c0_i32_0 = arith.constant 0 : i32
    return %arg0, %c0_i32 : i32, i32
  }
}

</mosaic_0001>

<llo_original>
// kernel: mlp_forward.1
$region0: #{mlp_forward.1}
  #allocation0 [shape = 'u32[]', space=smem, size = 0x4, offset = 0x4, fixed_abs, tag = 'smem constant byte address 0x4 - core index']
  #allocation1 [shape = 'u32[72,128]{1,0:T(1,128)}', space=vmem, size = 0x9000, scoped, tag = 'internal scratch']
  %s0 = inlined_call_operand.vmem [shape: f32[16,120], index: 0, kind: input, shape index: {}]
  %s1 = inlined_call_operand.vmem [shape: f32[120,32], index: 1, kind: input, shape index: {}]
  %s2 = inlined_call_operand.vmem [shape: f32[1,32], index: 2, kind: input, shape index: {}]
  %s3 = inlined_call_operand.vmem [shape: f32[32,8], index: 3, kind: input, shape index: {}]
  %s4 = inlined_call_operand.vmem [shape: f32[1,8], index: 4, kind: input, shape index: {}]
  %s5 = inlined_call_operand.vmem [shape: f32[16,8], index: 5, kind: output, shape index: {}]
  %s6 = sld [smem:[#allocation0]]
  $region30: #{mlp_forward.1} parent=0
    _
  %s8 = ssub.s32 1, %s6
  %s9 = scalar_select 0, %s8, %s6
  // Predicated region
  $region2: #{mlp_forward.1} parent=0 // pred_check
    _
  $region3: #{mlp_forward.1} parent=0 // pred_check_branch
    %11 = sbr.rel (0) target = $region5
  $region4: #{mlp_forward.1} parent=0 // pred_region
    _
  $region5: #{mlp_forward.1} parent=0 // pred_fallthru
    _
  // Predicated region
  $region6: #{mlp_forward.1} parent=0 // pred_check
    _
  $region7: #{mlp_forward.1} parent=0 // pred_check_branch
    %13 = sbr.rel (0) target = $region9
  $region8: #{mlp_forward.1} parent=0 // pred_region
    _
  $region9: #{mlp_forward.1} parent=0 // pred_fallthru
    _
  // Predicated region
  $region10: #{mlp_forward.1} parent=0 // pred_check
    _
  $region11: #{mlp_forward.1} parent=0 // pred_check_branch
    %15 = sbr.rel (0) target = $region13
  $region12: #{mlp_forward.1} parent=0 // pred_region
    _
  $region13: #{mlp_forward.1} parent=0 // pred_fallthru
    _
  // Predicated region
  $region14: #{mlp_forward.1} parent=0 // pred_check
    _
  $region15: #{mlp_forward.1} parent=0 // pred_check_branch
    %17 = sbr.rel (0) target = $region17
  $region16: #{mlp_forward.1} parent=0 // pred_region
    _
  $region17: #{mlp_forward.1} parent=0 // pred_fallthru
    _
  // Predicated region
  $region18: #{mlp_forward.1} parent=0 // pred_check
    _
  $region19: #{mlp_forward.1} parent=0 // pred_check_branch
    %19 = sbr.rel (0) target = $region21
  $region20: #{mlp_forward.1} parent=0 // pred_region
    _
  $region21: #{mlp_forward.1} parent=0 // pred_fallthru
    _
  %v20 = vld [vmem:[%s0] sm:$0xff]
  %v21 = vld [vmem:[%s0 + $0x8] sm:$0xff]
  %v22 = vld [vmem:[%s1] sm:$0xff]
  %v23 = vld [vmem:[%s1 + $0x8] sm:$0xff]
  %v24 = vld [vmem:[%s1 + $0x10] sm:$0xff]
  %v25 = vld [vmem:[%s1 + $0x18] sm:$0xff]
  %v26 = vld [vmem:[%s1 + $0x20] sm:$0xff]
  %v27 = vld [vmem:[%s1 + $0x28] sm:$0xff]
  %v28 = vld [vmem:[%s1 + $0x30] sm:$0xff]
  %v29 = vld [vmem:[%s1 + $0x38] sm:$0xff]
  %v30 = vld [vmem:[%s1 + $0x40] sm:$0xff]
  %v31 = vld [vmem:[%s1 + $0x48] sm:$0xff]
  %v32 = vld [vmem:[%s1 + $0x50] sm:$0xff]
  %v33 = vld [vmem:[%s1 + $0x58] sm:$0xff]
  %v34 = vld [vmem:[%s1 + $0x60] sm:$0xff]
  %v35 = vld [vmem:[%s1 + $0x68] sm:$0xff]
  %v36 = vld [vmem:[%s1 + $0x70] sm:$0xff]
  %v37 = vld [vmem:[%s2] sm:$0x1]
  %v39 = vperm.slane %v37, 0
  %vm41 = vcmask 982016
  %v43 = vsel %vm41, %v20, 0
  %v46 = vsel %vm41, %v21, 0
  %48 = vmatpush.msra.mxu0 0.0
  %49 = vmatpush.msra.mxu0 %v36
  %50 = vmatpush.msra.mxu0 %v35
  %51 = vmatpush.msra.mxu0 %v34
  %52 = vmatpush.msra.mxu0 %v33
  %53 = vmatpush.msra.mxu0 %v32
  %54 = vmatpush.msra.mxu0 %v31
  %55 = vmatpush.msra.mxu0 %v30
  %56 = vmatpush.msra.mxu0 %v29
  %57 = vmatpush.msra.mxu0 %v28
  %58 = vmatpush.msra.mxu0 %v27
  %59 = vmatpush.msra.mxu0 %v26
  %60 = vmatpush.msra.mxu0 %v25
  %61 = vmatpush.msra.mxu0 %v24
  %62 = vmatpush.msra.mxu0 %v23
  %63 = vmatpush.msra.mxu0 %v22
  %64 = vmatmul.f32.gmra.mxu0 %v43
  %v65 = vpop.f32.mrf.mxu0
  %v66 = vadd.f32 %v39, %v65
  %67 = vmatmul.f32.gmra.mxu0 %v46
  %v68 = vpop.f32.mrf.mxu0
  %v69 = vadd.f32 %v39, %v68
  %70 = vdwg.mxu0
  %v71 = vmax.f32 %v66, 0.0
  %v72 = vmax.f32 %v69, 0.0
  %v73 = vld [vmem:[%s3] sm:$0xff]
  %v74 = vld [vmem:[%s3 + $0x8] sm:$0xff]
  %v75 = vld [vmem:[%s3 + $0x10] sm:$0xff]
  %v76 = vld [vmem:[%s3 + $0x18] sm:$0xff]
  %v77 = vld [vmem:[%s4] sm:$0x1]
  %v79 = vperm.slane %v77, 0
  %vm81 = vcmask 261120
  %v83 = vsel %vm81, %v71, 0
  %v86 = vsel %vm81, %v72, 0
  %88 = vmatpush.msra.mxu0 0.0
  %89 = vmatpush.msra.mxu0 0.0
  %90 = vmatpush.msra.mxu0 0.0
  %91 = vmatpush.msra.mxu0 0.0
  %92 = vmatpush.msra.mxu0 0.0
  %93 = vmatpush.msra.mxu0 0.0
  %94 = vmatpush.msra.mxu0 0.0
  %95 = vmatpush.msra.mxu0 0.0
  %96 = vmatpush.msra.mxu0 0.0
  %97 = vmatpush.msra.mxu0 0.0
  %98 = vmatpush.msra.mxu0 0.0
  %99 = vmatpush.msra.mxu0 0.0
  %100 = vmatpush.msra.mxu0 %v76
  %101 = vmatpush.msra.mxu0 %v75
  %102 = vmatpush.msra.mxu0 %v74
  %103 = vmatpush.msra.mxu0 %v73
  %104 = vmatmul.f32.gmra.mxu0 %v83
  %v105 = vpop.f32.mrf.mxu0
  %v106 = vadd.f32 %v79, %v105
  %107 = vmatmul.f32.gmra.mxu0 %v86
  %v108 = vpop.f32.mrf.mxu0
  %v109 = vadd.f32 %v79, %v108
  %110 = vdwg.mxu0
  %vm111 = vcmask 64512
  %112 = vst.msk [vmem:[%s5] sm:$0xff] %vm111, %v106
  %113 = vst.msk [vmem:[%s5 + $0x8] sm:$0xff] %vm111, %v109
  // Predicated region
  $region22: #{mlp_forward.1} parent=0 // pred_check
    _
  $region23: #{mlp_forward.1} parent=0 // pred_check_branch
    %115 = sbr.rel (0) target = $region25
  $region24: #{mlp_forward.1} parent=0 // pred_region
    _
  $region25: #{mlp_forward.1} parent=0 // pred_fallthru
    _
  // Predicated region
  $region26: #{mlp_forward.1} parent=0 // pred_check
    _
  $region27: #{mlp_forward.1} parent=0 // pred_check_branch
    %117 = sbr.rel (0) target = $region29
  $region28: #{mlp_forward.1} parent=0 // pred_region
    _
  $region29: #{mlp_forward.1} parent=0 // pred_fallthru
    _

</llo_original>
